<compile_context>
chip_gen: v7x
topology: tpu7x:2x2x1
jax: 0.10.0
libtpu: 0.0.40
codegen_flags: <defaults>
</compile_context>

<pallas_src>
import math

import jax
import jax.numpy as jnp
from jax.experimental import pallas as pl
from jax.experimental.pallas import tpu as pltpu

LAYERS = [8, 16, 8]        # hidden widths; input dim = 1, output dim = 1
LANE = 1024                # lane width of the 2D slab (8 vregs wide)
MAX_ROW_TILE = 512         # up to (512, 1024) f32 = 2 MiB per streamed block
SMALL_B = 4096             # below this, plain XLA FMA beats a kernel launch


def _fma_kernel(x_ref, a_ref, c_ref, o_ref):
    # y = a * x + c   (a, c are scalars in SMEM; x / o are (row_tile, LANE) tiles)
    o_ref[...] = x_ref[...] * a_ref[0] + c_ref[0]


def _fold_affine(params):
    """Fold the Linear chain (weights stored as (in, out)) into scalars a, c."""
    w0, b0 = params[0]
    a = w0.astype(jnp.float32)                    # (1, d1)
    c = b0.astype(jnp.float32)[None, :]           # (1, d1)
    for w, b in params[1:]:
        w = w.astype(jnp.float32)
        a = a @ w
        c = c @ w + b.astype(jnp.float32)[None, :]
    # final layer has out-dim 1, so a and c are (1, 1) -> flatten to (1,)
    return a.reshape((1,)), c.reshape((1,))


@jax.jit
def mlp_forward(x, params):
    """x: (B, 1) float32 -> (B, 1) float32, matching Model.forward."""
    B = x.shape[0]
    a, c = _fold_affine(params)
    xf = x.astype(jnp.float32).reshape(B)

    # Tiny batches: launch overhead dominates -> let XLA fuse the FMA.
    if B < SMALL_B:
        return (xf * a[0] + c[0]).reshape(B, 1)

    # Pad to a multiple of 8*LANE and view as a sublane-dense 2D slab.
    bp = 8 * LANE * pl.cdiv(B, 8 * LANE)
    if bp != B:
        xf = jnp.pad(xf, (0, bp - B))
    rows = bp // LANE
    x_slab = xf.reshape(rows, LANE)

    # Row tile: <= 2 MiB blocks, multiple of 8 sublanes, and >= 2 grid steps
    # whenever the slab has >= 16 rows (so both v7x cores are fed).
    half = pl.cdiv(rows, 2)
    row_tile = min(MAX_ROW_TILE, max(8, 8 * pl.cdiv(half, 8)))
    grid = (pl.cdiv(rows, row_tile),)

    out = pl.pallas_call(
        _fma_kernel,
        out_shape=jax.ShapeDtypeStruct((rows, LANE), jnp.float32),
        grid=grid,
        in_specs=[
            pl.BlockSpec((row_tile, LANE), lambda i: (i, 0)),          # x slab tile
            pl.BlockSpec(memory_space=pltpu.MemorySpace.SMEM),         # a (scalar)
            pl.BlockSpec(memory_space=pltpu.MemorySpace.SMEM),         # c (scalar)
        ],
        out_specs=pl.BlockSpec((row_tile, LANE), lambda i: (i, 0)),
        input_output_aliases={0: 0},   # reuse padded input slab for the output
        compiler_params=pltpu.CompilerParams(
            dimension_semantics=("parallel",)),
    )(x_slab, a, c)

    return out.reshape(bp)[:B].reshape(B, 1)


def init_params(key):
    """Deterministic init mirroring nn.Linear's U(-1/sqrt(fan_in), 1/sqrt(fan_in)).
    Weights stored as (in, out)."""
    dims = [1] + LAYERS + [1]                     # [1, 8, 16, 8, 1]
    params = []
    for i in range(len(dims) - 1):
        fan_in, fan_out = dims[i], dims[i + 1]
        key, kw, kb = jax.random.split(key, 3)
        bound = 1.0 / math.sqrt(fan_in)
        w = jax.random.uniform(kw, (fan_in, fan_out), jnp.float32, -bound, bound)
        b = jax.random.uniform(kb, (fan_out,), jnp.float32, -bound, bound)
        params.append((w, b))
    return params


def reference_forward(x, params):
    h = x.astype(jnp.float32)
    for (w, b) in params:
        h = h @ w + b
    return h


if __name__ == "__main__":
    key = jax.random.PRNGKey(0)
    key, kx1, kx2 = jax.random.split(key, 3)
    params = init_params(key)

    # Pallas path: non-divisible batch -> exercises padding, 2 parallel grid
    # steps, and the ragged last block.
    B1 = 20000
    x1 = jax.random.normal(kx1, (B1, 1), jnp.float32)
    y1 = jax.block_until_ready(mlp_forward(x1, params))
    y1_ref = reference_forward(x1, params)
    assert y1.shape == (B1, 1)
    assert jnp.allclose(y1, y1_ref, atol=1e-5, rtol=1e-4), "pallas path mismatch"

    # Small-batch path: fused XLA FMA (no kernel launch).
    B2 = 100
    x2 = jax.random.normal(kx2, (B2, 1), jnp.float32)
    y2 = jax.block_until_ready(mlp_forward(x2, params))
    y2_ref = reference_forward(x2, params)
    assert y2.shape == (B2, 1)
    assert jnp.allclose(y2, y2_ref, atol=1e-5, rtol=1e-4), "small path mismatch"

    print("KERNEL_OK")
</pallas_src>

<mosaic_0001>
module attributes {stable_mosaic.version = 11 : i64} {
  func.func @_fma_kernel(%arg0: i32, %arg1: memref<16x1024xf32, #tpu.memory_space<vmem>>, %arg2: memref<1xf32, #tpu.memory_space<smem>>, %arg3: memref<1xf32, #tpu.memory_space<smem>>, %arg4: memref<16x1024xf32, #tpu.memory_space<vmem>>) attributes {dimension_semantics = [#tpu.dimension_semantics<parallel>], iteration_bounds = array<i64: 2>, scalar_prefetch = 0 : i64, scratch_operands = 0 : i64, tpu.core_type = #tpu.core_type<tc>, window_params = [{transform_indices = @transform_0, window_bounds = array<i64: 16, 1024>}, {transform_indices = @transform_1, window_bounds = array<i64: 1>}, {transform_indices = @transform_2, window_bounds = array<i64: 1>}, {transform_indices = @transform_3, window_bounds = array<i64: 16, 1024>}]} {
    %c0 = arith.constant 0 : index
    %c0_0 = arith.constant 0 : index
    %0 = vector.load %arg1[%c0, %c0_0] : memref<16x1024xf32, #tpu.memory_space<vmem>>, vector<16x1024xf32>
    %c0_1 = arith.constant 0 : index
    %1 = memref.load %arg2[%c0_1] : memref<1xf32, #tpu.memory_space<smem>>
    %2 = vector.broadcast %1 : f32 to vector<16x1024xf32>
    %3 = arith.mulf %0, %2 : vector<16x1024xf32>
    %c0_2 = arith.constant 0 : index
    %4 = memref.load %arg3[%c0_2] : memref<1xf32, #tpu.memory_space<smem>>
    %5 = vector.broadcast %4 : f32 to vector<16x1024xf32>
    %6 = arith.addf %3, %5 : vector<16x1024xf32>
    %c0_3 = arith.constant 0 : index
    %c0_4 = arith.constant 0 : index
    %7 = vector.load %arg4[%c0_3, %c0_4] : memref<16x1024xf32, #tpu.memory_space<vmem>>, vector<16x1024xf32>
    tpu.vector_store %arg4[%c0_3, %c0_4], %6 {strides = array<i32>} : memref<16x1024xf32, #tpu.memory_space<vmem>>, vector<16x1024xf32>,
    return
  }
  func.func @transform_0(%arg0: i32) -> (i32, i32) {
    %c0_i32 = arith.constant 0 : i32
    %c0_i32_0 = arith.constant 0 : i32
    return %arg0, %c0_i32 : i32, i32
  }
  func.func @transform_1(%arg0: i32) -> i32 {
    %c0_i32 = arith.constant 0 : i32
    %c0_i32_0 = arith.constant 0 : i32
    return %c0_i32 : i32
  }
  func.func @transform_2(%arg0: i32) -> i32 {
    %c0_i32 = arith.constant 0 : i32
    %c0_i32_0 = arith.constant 0 : i32
    return %c0_i32 : i32
  }
  func.func @transform_3(%arg0: i32) -> (i32, i32) {
    %c0_i32 = arith.constant 0 : i32
    %c0_i32_0 = arith.constant 0 : i32
    return %arg0, %c0_i32 : i32, i32
  }
}

</mosaic_0001>

<llo_original>
// kernel: mlp_forward.1
$region0: #{mlp_forward.1}
  #allocation0 [shape = 'u32[]', space=smem, size = 0x4, offset = 0x4, fixed_abs, tag = 'smem constant byte address 0x4 - core index']
  #allocation1 [shape = 'u32[144,128]{1,0:T(1,128)}', space=vmem, size = 0x12000, scoped, tag = 'internal scratch']
  #allocation2 [shape = 'f32[1]{0:T(128)S(6)}', space=smem, size = 0x200, scoped, tag = 'scoped memory for mlp_forward.1']
  #allocation3 [shape = 'f32[1]{0:T(128)S(6)}', space=smem, size = 0x200, scoped, tag = 'scoped memory for mlp_forward.1']
  %s0 = inlined_call_operand.vmem [shape: f32[24,1024], index: 0, kind: input, shape index: {}, may-alias: {0,3}]
  %s1 = inlined_call_operand.<no memory space> [shape: f32[1], index: 1, kind: input, shape index: {}]
  %s2 = inlined_call_operand.<no memory space> [shape: f32[1], index: 2, kind: input, shape index: {}]
  %s3 = inlined_call_operand.vmem [shape: f32[24,1024], index: 3, kind: output, shape index: {}, may-alias: {0,3}]
  %s4 = sld [smem:[#allocation0]]
  $region71: #{mlp_forward.1} parent=0
    _
  %s6 = ssub.s32 1, %s4
  %s7 = scalar_select 0, %s6, %s4
  %8 = sst [smem:[#allocation2]] %s1
  %9 = sst [smem:[#allocation3]] %s2
  $region1: #{mlp_forward.1} parent=0
    #allocation4 [shape = 'u8[131072]{0}', space=vmem, size = 0x20000, scoped, tag = 'output window, operand 0']
    loop: start=0, step=1, limit=4
    $region2: #{mlp_forward.1} parent=1 // loop_pre_header
      _
    $region3: #{mlp_forward.1} parent=1 // loop_header
      %s11 = sphi 0, %s15
      %p12 = scmp.ge.s32.totalorder %s11, 4
      %s21 = sphi 0, %s23
      %s24 = sphi 0, %s21
      %s25 = sphi 0, %s24
      %s41 = sphi 0, %s25
      %s45 = sphi 0, %s45
      %s47 = sphi 0, %s45
      %s48 = sphi 0, %s47
      %s62 = sphi 0, %s48
      %s66 = sphi 0, %s66
      %s68 = sphi 0, %s66
      %s69 = sphi 0, %s68
      %s83 = sphi 0, %s69
      %s89 = sphi 0, %s91
      %s92 = sphi 0, %s89
      %s93 = sphi 0, %s92
      %s109 = sphi 0, %s93
    $region4: #{mlp_forward.1} parent=1 // loop_header_branch
      %14 = sbr.rel (%p12) target = $region8
    $region5: #{mlp_forward.1} parent=1 // loop_body
      %s16 = ssub.s32 %s11, 1
      %s17 = ssub.s32 %s11, 2
      %s18 = sadd.s32 %s11, 1
      %s19 = ssub.s32 %s11, %s18
      %p20 = scmp.eq.s32.totalorder %s19, 0
      %s22 = sadd.s32 %s21, 1
      %s23 = scalar_select %p20, %s21, %s22
      %p26 = pneg %p20
      %p27 = scmp.eq.s32.totalorder %s11, 1
      %p28 = por %p26, %p27
      %p29 = scmp.ne.s32.totalorder %s21, %s24
      %p30 = scmp.eq.s32.totalorder %s11, 0
      %p31 = por %p29, %p30
      %p32 = scmp.ne.s32.totalorder %s21, %s24
      %p33 = scmp.eq.s32.totalorder %s16, 1
      %p34 = por %p32, %p33
      %p35 = scmp.ne.s32.totalorder %s24, %s25
      %p36 = scmp.eq.s32.totalorder %s16, 0
      %p37 = por %p35, %p36
      %p38 = scmp.ne.s32.totalorder %s24, %s25
      %p39 = scmp.eq.s32.totalorder %s17, 1
      %p40 = por %p38, %p39
      %p42 = scmp.ne.s32.totalorder %s25, %s41
      %p43 = scmp.eq.s32.totalorder %s17, 0
      %p44 = por %p42, %p43
      %s46 = sadd.s32 %s45, 1
      %p49 = scmp.eq.s32.totalorder %s11, 1
      %p50 = scmp.ne.s32.totalorder %s45, %s47
      %p51 = scmp.eq.s32.totalorder %s11, 0
      %p52 = por %p50, %p51
      %p53 = scmp.ne.s32.totalorder %s45, %s47
      %p54 = scmp.eq.s32.totalorder %s16, 1
      %p55 = por %p53, %p54
      %p56 = scmp.ne.s32.totalorder %s47, %s48
      %p57 = scmp.eq.s32.totalorder %s16, 0
      %p58 = por %p56, %p57
      %p59 = scmp.ne.s32.totalorder %s47, %s48
      %p60 = scmp.eq.s32.totalorder %s17, 1
      %p61 = por %p59, %p60
      %p63 = scmp.ne.s32.totalorder %s48, %s62
      %p64 = scmp.eq.s32.totalorder %s17, 0
      %p65 = por %p63, %p64
      %s67 = sadd.s32 %s66, 1
      %p70 = scmp.eq.s32.totalorder %s11, 1
      %p71 = scmp.ne.s32.totalorder %s66, %s68
      %p72 = scmp.eq.s32.totalorder %s11, 0
      %p73 = por %p71, %p72
      %p74 = scmp.ne.s32.totalorder %s66, %s68
      %p75 = scmp.eq.s32.totalorder %s16, 1
      %p76 = por %p74, %p75
      %p77 = scmp.ne.s32.totalorder %s68, %s69
      %p78 = scmp.eq.s32.totalorder %s16, 0
      %p79 = por %p77, %p78
      %p80 = scmp.ne.s32.totalorder %s68, %s69
      %p81 = scmp.eq.s32.totalorder %s17, 1
      %p82 = por %p80, %p81
      %p84 = scmp.ne.s32.totalorder %s69, %s83
      %p85 = scmp.eq.s32.totalorder %s17, 0
      %p86 = por %p84, %p85
      %s87 = ssub.s32 %s11, %s18
      %p88 = scmp.eq.s32.totalorder %s87, 0
      %s90 = sadd.s32 %s89, 1
      %s91 = scalar_select %p88, %s89, %s90
      %p94 = pneg %p88
      %p95 = scmp.eq.s32.totalorder %s11, 1
      %p96 = por %p94, %p95
      %p97 = scmp.ne.s32.totalorder %s89, %s92
      %p98 = scmp.eq.s32.totalorder %s11, 0
      %p99 = por %p97, %p98
      %p100 = scmp.ne.s32.totalorder %s89, %s92
      %p101 = scmp.eq.s32.totalorder %s16, 1
      %p102 = por %p100, %p101
      %p103 = scmp.ne.s32.totalorder %s92, %s93
      %p104 = scmp.eq.s32.totalorder %s16, 0
      %p105 = por %p103, %p104
      %p106 = scmp.ne.s32.totalorder %s92, %s93
      %p107 = scmp.eq.s32.totalorder %s17, 1
      %p108 = por %p106, %p107
      %p110 = scmp.ne.s32.totalorder %s93, %s109
      %p111 = scmp.eq.s32.totalorder %s17, 0
      %p112 = por %p110, %p111
      %p113 = scmp.le.s32.totalorder 1, %s11
      %p114 = scmp.lt.s32.totalorder %s11, 3
      %p115 = pnand %p113, %p114
      %p116 = pneg %p115
      // Predicated region
      $region9: #{mlp_forward.1} parent=5 // pred_check
        _
      $region10: #{mlp_forward.1} parent=5 // pred_check_branch
        %118 = sbr.rel (%p115) target = $region12
      $region11: #{mlp_forward.1} parent=5 // pred_region
        %s119 = ssub.s32 %s11, 1
        // Predicated region
        $region13: #{mlp_forward.1} parent=11 // pred_check
          %p120 = pneg %p58
        $region14: #{mlp_forward.1} parent=11 // pred_check_branch
          %122 = sbr.rel (%p120) target = $region16
        $region15: #{mlp_forward.1} parent=11 // pred_region
          _
        $region16: #{mlp_forward.1} parent=11 // pred_fallthru
          _
        // Predicated region
        $region17: #{mlp_forward.1} parent=11 // pred_check
          %p123 = pneg %p79
        $region18: #{mlp_forward.1} parent=11 // pred_check_branch
          %125 = sbr.rel (%p123) target = $region20
        $region19: #{mlp_forward.1} parent=11 // pred_region
          _
        $region20: #{mlp_forward.1} parent=11 // pred_fallthru
          _
      $region12: #{mlp_forward.1} parent=5 // pred_fallthru
        _
      %p126 = scmp.lt.s32.totalorder %s11, 2
      // Predicated region
      $region21: #{mlp_forward.1} parent=5 // pred_check
        %p127 = pneg %p126
      $region22: #{mlp_forward.1} parent=5 // pred_check_branch
        %129 = sbr.rel (%p127) target = $region24
      $region23: #{mlp_forward.1} parent=5 // pred_region
        // Predicated region
        $region25: #{mlp_forward.1} parent=23 // pred_check
          %p130 = pneg %p31
        $region26: #{mlp_forward.1} parent=23 // pred_check_branch
          %132 = sbr.rel (%p130) target = $region28
        $region27: #{mlp_forward.1} parent=23 // pred_region
          %s133 = smul.u32 2, %s11
          %s134 = ssub.s32 3, %s133
          %p135 = scmp.lt.s32.totalorder %s134, 2
          %s136 = scalar_select %p135, %s134, 2
          %s137 = smul.u32 128, %s136
          %s138 = smul.u32 %s137, 8
          %p139 = scmp.lt.s32.totalorder %s133, 2
          %s140 = scalar_select %p139, %s133, 2
          %s141 = smul.addr %s140, 8
          %s142 = smul.addr %s141, 8
          %s143 = scalar_lea.vmem %s0, %s142
          %s144 = smul.u32 2, %s11
          %s145 = ssub.s32 3, %s144
          %p146 = scmp.lt.s32.totalorder %s145, 2
          %s147 = scalar_select %p146, %s145, 2
          %s148 = smul.u32 128, %s147
          %s149 = smul.u32 %s148, 8
        $region28: #{mlp_forward.1} parent=23 // pred_fallthru
          _
      $region24: #{mlp_forward.1} parent=5 // pred_fallthru
        _
      %p150 = scmp.le.s32.totalorder 1, %s11
      %p151 = scmp.lt.s32.totalorder %s11, 3
      %p152 = pnand %p150, %p151
      %p153 = pneg %p152
      // Predicated region
      $region29: #{mlp_forward.1} parent=5 // pred_check
        _
      $region30: #{mlp_forward.1} parent=5 // pred_check_branch
        %155 = sbr.rel (%p152) target = $region32
      $region31: #{mlp_forward.1} parent=5 // pred_region
        %s156 = ssub.s32 %s11, 1
        %s157 = smul.u32 2, %s16
        %s158 = ssub.s32 3, %s157
        %p159 = scmp.lt.s32.totalorder %s158, 2
        %s160 = scalar_select %p159, %s158, 2
        %s161 = smul.u32 128, %s160
        %s162 = smul.u32 %s161, 8
        %p163 = scmp.lt.s32.totalorder %s157, 2
        %s164 = scalar_select %p163, %s157, 2
        %s165 = smul.addr %s164, 8
        %s166 = smul.addr %s165, 8
        %s167 = scalar_lea.vmem %s0, %s166
        %p168 = pneg %p37
        %p169 = pneg %p34
        %p170 = pneg %p58
        %p171 = pneg %p55
        %p172 = pneg %p79
        %p173 = pneg %p76
        %p174 = pneg %p105
        %p175 = pneg %p102
        %s176 = sand.u32 %s92, 1
        %s177 = sand.u32 %s92, 1
        %s178 = smul.addr %s177, 128
        %s179 = scalar_lea.vmem [#allocation4], %s178
        %s180 = smul.u32 2, %s16
        %s181 = ssub.s32 3, %s180
        %p182 = scmp.lt.s32.totalorder %s181, 2
        %s183 = scalar_select %p182, %s181, 2
        %s184 = smul.u32 128, %s183
        %s185 = smul.u32 %s184, 8
        %p186 = scmp.lt.s32.totalorder %s180, 2
        %s187 = scalar_select %p186, %s180, 2
        %s188 = smul.addr %s187, 8
        %s189 = smul.addr %s188, 8
        %s190 = scalar_lea.vmem %s0, %s189
        %s191 = smul.u32 2, %s16
        %s192 = ssub.s32 3, %s191
        %p193 = scmp.lt.s32.totalorder %s192, 2
        %s194 = scalar_select %p193, %s192, 2
        %s195 = smul.u32 128, %s194
        %s196 = smul.u32 %s195, 8
        %s197 = smul.u32 2, %s16
        %s198 = ssub.s32 3, %s197
        %p199 = scmp.lt.s32.totalorder %s198, 2
        %s200 = scalar_select %p199, %s198, 2
        %s201 = smul.u32 128, %s200
        %s202 = smul.u32 %s201, 8
        %v203 = vld [vmem:[%s190] sm:$0xff]
        %v204 = vld [vmem:[%s190 + $0x8] sm:$0xff]
        %v205 = vld [vmem:[%s190 + $0x10] sm:$0xff]
        %v206 = vld [vmem:[%s190 + $0x18] sm:$0xff]
        %v207 = vld [vmem:[%s190 + $0x20] sm:$0xff]
        %v208 = vld [vmem:[%s190 + $0x28] sm:$0xff]
        %v209 = vld [vmem:[%s190 + $0x30] sm:$0xff]
        %v210 = vld [vmem:[%s190 + $0x38] sm:$0xff]
        %v211 = vld [vmem:[%s190 + $0x40] sm:$0xff]
        %v212 = vld [vmem:[%s190 + $0x48] sm:$0xff]
        %v213 = vld [vmem:[%s190 + $0x50] sm:$0xff]
        %v214 = vld [vmem:[%s190 + $0x58] sm:$0xff]
        %v215 = vld [vmem:[%s190 + $0x60] sm:$0xff]
        %v216 = vld [vmem:[%s190 + $0x68] sm:$0xff]
        %v217 = vld [vmem:[%s190 + $0x70] sm:$0xff]
        %v218 = vld [vmem:[%s190 + $0x78] sm:$0xff]
        %s219 = sld [smem:[#allocation2]]
        %v220 = vstv %s219
        %v221 = vmul.f32 %v203, %v220
        %v222 = vmul.f32 %v204, %v220
        %v223 = vmul.f32 %v205, %v220
        %v224 = vmul.f32 %v206, %v220
        %v225 = vmul.f32 %v207, %v220
        %v226 = vmul.f32 %v208, %v220
        %v227 = vmul.f32 %v209, %v220
        %v228 = vmul.f32 %v210, %v220
        %v229 = vmul.f32 %v211, %v220
        %v230 = vmul.f32 %v212, %v220
        %v231 = vmul.f32 %v213, %v220
        %v232 = vmul.f32 %v214, %v220
        %v233 = vmul.f32 %v215, %v220
        %v234 = vmul.f32 %v216, %v220
        %v235 = vmul.f32 %v217, %v220
        %v236 = vmul.f32 %v218, %v220
        %s237 = sld [smem:[#allocation3]]
        %v238 = vstv %s237
        %v239 = vadd.f32 %v221, %v238
        %v240 = vadd.f32 %v222, %v238
        %v241 = vadd.f32 %v223, %v238
        %v242 = vadd.f32 %v224, %v238
        %v243 = vadd.f32 %v225, %v238
        %v244 = vadd.f32 %v226, %v238
        %v245 = vadd.f32 %v227, %v238
        %v246 = vadd.f32 %v228, %v238
        %v247 = vadd.f32 %v229, %v238
        %v248 = vadd.f32 %v230, %v238
        %v249 = vadd.f32 %v231, %v238
        %v250 = vadd.f32 %v232, %v238
        %v251 = vadd.f32 %v233, %v238
        %v252 = vadd.f32 %v234, %v238
        %v253 = vadd.f32 %v235, %v238
        %v254 = vadd.f32 %v236, %v238
        %255 = vst [vmem:[%s179] sm:$0xff] %v239
        %256 = vst [vmem:[%s179 + $0x8] sm:$0xff] %v240
        %257 = vst [vmem:[%s179 + $0x10] sm:$0xff] %v241
        %258 = vst [vmem:[%s179 + $0x18] sm:$0xff] %v242
        %259 = vst [vmem:[%s179 + $0x20] sm:$0xff] %v243
        %260 = vst [vmem:[%s179 + $0x28] sm:$0xff] %v244
        %261 = vst [vmem:[%s179 + $0x30] sm:$0xff] %v245
        %262 = vst [vmem:[%s179 + $0x38] sm:$0xff] %v246
        %263 = vst [vmem:[%s179 + $0x40] sm:$0xff] %v247
        %264 = vst [vmem:[%s179 + $0x48] sm:$0xff] %v248
        %265 = vst [vmem:[%s179 + $0x50] sm:$0xff] %v249
        %266 = vst [vmem:[%s179 + $0x58] sm:$0xff] %v250
        %267 = vst [vmem:[%s179 + $0x60] sm:$0xff] %v251
        %268 = vst [vmem:[%s179 + $0x68] sm:$0xff] %v252
        %269 = vst [vmem:[%s179 + $0x70] sm:$0xff] %v253
        %270 = vst [vmem:[%s179 + $0x78] sm:$0xff] %v254
        %s271 = sand.u32 %s92, 1
        %s272 = sand.u32 %s92, 1
        %s273 = smul.addr %s272, 128
        %s274 = scalar_lea.vmem [#allocation4], %s273
        // Predicated region
        $region33: #{mlp_forward.1} parent=31 // pred_check
          %p275 = pneg %p102
        $region34: #{mlp_forward.1} parent=31 // pred_check_branch
          %277 = sbr.rel (%p275) target = $region36
        $region35: #{mlp_forward.1} parent=31 // pred_region
          %s278 = smul.u32 2, %s16
          %s279 = ssub.s32 3, %s278
          %p280 = scmp.lt.s32.totalorder %s279, 2
          %s281 = scalar_select %p280, %s279, 2
          %s282 = smul.u32 128, %s281
          %s283 = smul.u32 %s282, 8
          %p284 = scmp.ne.s32.totalorder 0, %s283
          %s285 = smul.addr %s278, 8
          %s286 = smul.addr %s285, 8
          %s287 = scalar_lea.vmem %s3, %s286
          // Predicated region
          $region37: #{mlp_forward.1} parent=35 // pred_check
            %p288 = pneg %p284
          $region38: #{mlp_forward.1} parent=35 // pred_check_branch
            %290 = sbr.rel (%p288) target = $region40
          $region39: #{mlp_forward.1} parent=35 // pred_region
            // Predicated region
            $region41: #{mlp_forward.1} parent=39 // pred_check
              _
            $region42: #{mlp_forward.1} parent=39 // pred_check_branch
              %292 = sbr.rel (0) target = $region44
            $region43: #{mlp_forward.1} parent=39 // pred_region
              %s293 = sshrl.u32 %s281, 1
              // While loop
              $region45: #{mlp_forward.1} parent=43 // loop_pre_header
                _
              $region46: #{mlp_forward.1} parent=43 // loop_header
                %s295 = sphi 0, %s297
                %p296 = scmp.ge.s32.totalorder %s295, %s293
                %s300 = sphi 0, %s337
                %s301 = sphi %s274, %s340
                %s302 = sphi %s287, %s341
              $region47: #{mlp_forward.1} parent=43 // loop_header_branch
                %299 = sbr.rel (%p296) target = $region51
              $region48: #{mlp_forward.1} parent=43 // loop_body
                %v303 = vld [vmem:[%s301] sm:$0xff]
                %304 = vst [vmem:[%s302] sm:$0xff] %v303
                %v305 = vld [vmem:[%s301 + $0x40] sm:$0xff]
                %306 = vst [vmem:[%s302 + $0x40] sm:$0xff] %v305
                %v307 = vld [vmem:[%s301 + $0x8] sm:$0xff]
                %308 = vst [vmem:[%s302 + $0x8] sm:$0xff] %v307
                %v309 = vld [vmem:[%s301 + $0x48] sm:$0xff]
                %310 = vst [vmem:[%s302 + $0x48] sm:$0xff] %v309
                %v311 = vld [vmem:[%s301 + $0x10] sm:$0xff]
                %312 = vst [vmem:[%s302 + $0x10] sm:$0xff] %v311
                %v313 = vld [vmem:[%s301 + $0x50] sm:$0xff]
                %314 = vst [vmem:[%s302 + $0x50] sm:$0xff] %v313
                %v315 = vld [vmem:[%s301 + $0x18] sm:$0xff]
                %316 = vst [vmem:[%s302 + $0x18] sm:$0xff] %v315
                %v317 = vld [vmem:[%s301 + $0x58] sm:$0xff]
                %318 = vst [vmem:[%s302 + $0x58] sm:$0xff] %v317
                %v319 = vld [vmem:[%s301 + $0x20] sm:$0xff]
                %320 = vst [vmem:[%s302 + $0x20] sm:$0xff] %v319
                %v321 = vld [vmem:[%s301 + $0x60] sm:$0xff]
                %322 = vst [vmem:[%s302 + $0x60] sm:$0xff] %v321
                %v323 = vld [vmem:[%s301 + $0x28] sm:$0xff]
                %324 = vst [vmem:[%s302 + $0x28] sm:$0xff] %v323
                %v325 = vld [vmem:[%s301 + $0x68] sm:$0xff]
                %326 = vst [vmem:[%s302 + $0x68] sm:$0xff] %v325
                %v327 = vld [vmem:[%s301 + $0x30] sm:$0xff]
                %328 = vst [vmem:[%s302 + $0x30] sm:$0xff] %v327
                %v329 = vld [vmem:[%s301 + $0x70] sm:$0xff]
                %330 = vst [vmem:[%s302 + $0x70] sm:$0xff] %v329
                %v331 = vld [vmem:[%s301 + $0x38] sm:$0xff]
                %332 = vst [vmem:[%s302 + $0x38] sm:$0xff] %v331
                %v333 = vld [vmem:[%s301 + $0x78] sm:$0xff]
                %334 = vst [vmem:[%s302 + $0x78] sm:$0xff] %v333
                %s335 = sadd.s32 1, %s300
                %p336 = scmp.ge.s32.totalorder %s335, %s293
                %s337 = scalar_select %p336, 0, %s335
                %s338 = smul.u32 %s337, 128
                %s339 = smul.u32 %s337, 128
                %s340 = scalar_lea.vmem %s274, %s338 [#allocation4]
                %s341 = scalar_lea.vmem %s287, %s339
              $region49: #{mlp_forward.1} parent=43 // loop_footer
                %s297 = sadd.s32 %s295, 1
              $region50: #{mlp_forward.1} parent=43 // loop_footer_branch
                %294 = sbr.rel target = $region46
              $region51: #{mlp_forward.1} parent=43 // loop_exit
                _
              %s342 = sshrl.u32 %s281, 1
              %s343 = sand.u32 %s281, 1
              %s344 = smul.u32 %s342, 2
              %s345 = smul.u32 64, %s344
              %s346 = scalar_lea.vmem %s274, %s345 [#allocation4]
              %s347 = smul.u32 64, %s344
              %s348 = scalar_lea.vmem %s287, %s347
              // While loop
              $region52: #{mlp_forward.1} parent=43 // loop_pre_header
                _
              $region53: #{mlp_forward.1} parent=43 // loop_header
                %s350 = sphi 0, %s352
                %p351 = scmp.ge.s32.totalorder %s350, %s343
                %s355 = sphi 0, %s376
                %s356 = sphi %s346, %s379
                %s357 = sphi %s348, %s380
              $region54: #{mlp_forward.1} parent=43 // loop_header_branch
                %354 = sbr.rel (%p351) target = $region58
              $region55: #{mlp_forward.1} parent=43 // loop_body
                %v358 = vld [vmem:[%s356] sm:$0xff]
                %359 = vst [vmem:[%s357] sm:$0xff] %v358
                %v360 = vld [vmem:[%s356 + $0x8] sm:$0xff]
                %361 = vst [vmem:[%s357 + $0x8] sm:$0xff] %v360
                %v362 = vld [vmem:[%s356 + $0x10] sm:$0xff]
                %363 = vst [vmem:[%s357 + $0x10] sm:$0xff] %v362
                %v364 = vld [vmem:[%s356 + $0x18] sm:$0xff]
                %365 = vst [vmem:[%s357 + $0x18] sm:$0xff] %v364
                %v366 = vld [vmem:[%s356 + $0x20] sm:$0xff]
                %367 = vst [vmem:[%s357 + $0x20] sm:$0xff] %v366
                %v368 = vld [vmem:[%s356 + $0x28] sm:$0xff]
                %369 = vst [vmem:[%s357 + $0x28] sm:$0xff] %v368
                %v370 = vld [vmem:[%s356 + $0x30] sm:$0xff]
                %371 = vst [vmem:[%s357 + $0x30] sm:$0xff] %v370
                %v372 = vld [vmem:[%s356 + $0x38] sm:$0xff]
                %373 = vst [vmem:[%s357 + $0x38] sm:$0xff] %v372
                %s374 = sadd.s32 1, %s355
                %p375 = scmp.ge.s32.totalorder %s374, %s343
                %s376 = scalar_select %p375, 0, %s374
                %s377 = smul.u32 %s376, 64
                %s378 = smul.u32 %s376, 64
                %s379 = scalar_lea.vmem %s346, %s377 [#allocation4]
                %s380 = scalar_lea.vmem %s348, %s378
              $region56: #{mlp_forward.1} parent=43 // loop_footer
                %s352 = sadd.s32 %s350, 1
              $region57: #{mlp_forward.1} parent=43 // loop_footer_branch
                %349 = sbr.rel target = $region53
              $region58: #{mlp_forward.1} parent=43 // loop_exit
                _
            $region44: #{mlp_forward.1} parent=39 // pred_fallthru
              _
            // Predicated region
            $region59: #{mlp_forward.1} parent=39 // pred_check
              _
            $region60: #{mlp_forward.1} parent=39 // pred_check_branch
              %382 = sbr.rel target = $region62
            $region61: #{mlp_forward.1} parent=39 // pred_region
              _
            $region62: #{mlp_forward.1} parent=39 // pred_fallthru
              _
          $region40: #{mlp_forward.1} parent=35 // pred_fallthru
            _
          %383 = vnop
        $region36: #{mlp_forward.1} parent=31 // pred_fallthru
          _
      $region32: #{mlp_forward.1} parent=5 // pred_fallthru
        _
      %p384 = scmp.le.s32.totalorder 2, %s11
      // Predicated region
      $region63: #{mlp_forward.1} parent=5 // pred_check
        %p385 = pneg %p384
      $region64: #{mlp_forward.1} parent=5 // pred_check_branch
        %387 = sbr.rel (%p385) target = $region66
      $region65: #{mlp_forward.1} parent=5 // pred_region
        %s388 = ssub.s32 %s11, 2
        // Predicated region
        $region67: #{mlp_forward.1} parent=65 // pred_check
          %p389 = pneg %p108
        $region68: #{mlp_forward.1} parent=65 // pred_check_branch
          %391 = sbr.rel (%p389) target = $region70
        $region69: #{mlp_forward.1} parent=65 // pred_region
          %s392 = sand.u32 %s93, 1
          %s393 = sand.u32 %s93, 1
          %s394 = smul.addr %s393, 128
          %s395 = scalar_lea.vmem [#allocation4], %s394
        $region70: #{mlp_forward.1} parent=65 // pred_fallthru
          _
      $region66: #{mlp_forward.1} parent=5 // pred_fallthru
        _
    $region6: #{mlp_forward.1} parent=1 // loop_footer
      %s15 = sadd.s32 1, %s11
    $region7: #{mlp_forward.1} parent=1 // loop_footer_branch
      %10 = sbr.rel target = $region3
    $region8: #{mlp_forward.1} parent=1 // loop_exit
      _

</llo_original>
